<compile_context>
chip_gen: v5e
topology: v5e:2x2
jax: 0.10.0
libtpu: 0.0.40
codegen_flags: <defaults>
</compile_context>

<pallas_src>
import functools

import jax
import jax.numpy as jnp
from jax import lax
from jax.experimental import pallas as pl
from jax.experimental.pallas import tpu as pltpu


def _attn_kernel(hmask_ref,    # (H,)      f32  SMEM (scalar prefetch)
                 hid_ref,      # (1, T, E) bf16
                 rel_ref,      # (1, BQ, T) bf16 binary relation mask
                 wqkv_ref,     # (E, 3E)   bf16, scaling folded into Q columns
                 bqkv_ref,     # (1, 3E)   f32
                 wo_ref,       # (E, E)    bf16
                 bo_ref,       # (1, E)    f32
                 out_ref,      # (1, BQ, E) f32
                 qkv_ref,      # VMEM scratch (T, 3E) bf16, persists across q tiles
                 *, num_heads, head_dim, block_q, embed_dim):
    qt = pl.program_id(1)

    # Fused Q/K/V projection for the whole sequence, computed once per batch element
    # (the scratch persists across the "arbitrary" query-tile grid axis).
    @pl.when(qt == 0)
    def _():
        x = hid_ref[0]                                               # (T, E) bf16
        qkv = jnp.dot(x, wqkv_ref[...],
                      preferred_element_type=jnp.float32)            # (T, 3E) f32
        qkv = qkv + bqkv_ref[0]
        qkv_ref[...] = qkv.astype(jnp.bfloat16)                      # lane-dense store

    row0 = pl.multiple_of(qt * block_q, block_q)
    rel = rel_ref[0].astype(jnp.float32)                             # (BQ, T) in {0,1}

    acc = jnp.zeros((block_q, embed_dim), jnp.float32)

    # Per-head attention.  H is a small compile-time constant; every per-head
    # intermediate is dead at the end of its iteration, only the lane-dense (BQ, E)
    # accumulator is carried.
    for h in range(num_heads):
        qh = qkv_ref[pl.ds(row0, block_q), pl.ds(h * head_dim, head_dim)]           # (BQ, D)
        kh = qkv_ref[:, pl.ds(embed_dim + h * head_dim, head_dim)]                   # (T, D)
        vh = qkv_ref[:, pl.ds(2 * embed_dim + h * head_dim, head_dim)]               # (T, D)

        # Scores: contract the last dims directly (no explicit K transpose).
        s = lax.dot_general(qh, kh, (((1,), (1,)), ((), ())),
                            preferred_element_type=jnp.float32)      # (BQ, T) f32
        s = s - jnp.max(s, axis=-1, keepdims=True)
        e = jnp.exp(s)
        # softmax denominator via the EUP reciprocal instead of a VPU divide
        p = e * pl.reciprocal(jnp.sum(e, axis=-1, keepdims=True), approx=True)

        # update_weights_regarding_relations_on_specific_head: heads flagged in
        # heads_mask get their softmax weights gated by the binary relation mask
        # (float blend), fused into a single multiply p * (1 - m + m*rel).
        # TODO(synk): that helper lives outside the provided module source; semantics
        # reconstructed from convert_relations_to_binary_mask / commonsense helpers.
        m = hmask_ref[h]                                              # SMEM scalar
        p = p * ((1.0 - m) + m * rel)

        # Per-head output contribution folded through the matching Wo rows and
        # accumulated lane-dense -> no narrow ctx stores, no ctx @ Wo epilogue.
        ctx_h = jnp.dot(p.astype(jnp.bfloat16), vh,
                        preferred_element_type=jnp.float32)           # (BQ, D) f32
        wo_h = wo_ref[pl.ds(h * head_dim, head_dim), :]                # (D, E) bf16
        acc = acc + jnp.dot(ctx_h.astype(jnp.bfloat16), wo_h,
                            preferred_element_type=jnp.float32)        # (BQ, E) f32

    out_ref[0] = acc + bo_ref[0]


def bart_custom_mask_attention(hidden_states, relation_inputs, params, num_heads,
                               *, block_q=None):
    """Returns attn_output of shape (B, T, E) float32."""
    B, T, E = hidden_states.shape
    D = E // num_heads
    assert D * num_heads == E
    scaling = float(D) ** -0.5

    wq, bq, wk, bk, wv, bv, wo, bo, heads_mask = params

    if block_q is None:
        block_q = T if T <= 256 else 256
    assert T % block_q == 0 and (block_q == T or block_q % 8 == 0)

    # ---- wrapper-side packing ----
    wqkv = jnp.concatenate([wq * scaling, wk, wv], axis=1).astype(jnp.bfloat16)  # (E, 3E)
    bqkv = jnp.concatenate([bq * scaling, bk, bv], axis=1).astype(jnp.float32)   # (1, 3E)
    wo_b = wo.astype(jnp.bfloat16)
    bo_f = bo.astype(jnp.float32)
    x_b = hidden_states.astype(jnp.bfloat16)
    # convert_relations_to_binary_mask (values > 1 clipped to 1), pre-binarized to bf16
    rel_bin = jnp.minimum(relation_inputs, 1).astype(jnp.bfloat16)               # (B, T, T)
    hmask = heads_mask.reshape(num_heads).astype(jnp.float32)                    # (H,)

    kernel = functools.partial(_attn_kernel, num_heads=num_heads, head_dim=D,
                               block_q=block_q, embed_dim=E)

    # Constant-index weight/bias blocks (index_map always (0, 0) -> DMA'd once).
    # (On v7x these could additionally use pipeline_mode=pl.Buffered(1) to halve
    #  their VMEM footprint.)
    const = lambda shape: pl.BlockSpec(shape, lambda b, qt, hm: (0, 0))

    grid_spec = pltpu.PrefetchScalarGridSpec(
        num_scalar_prefetch=1,                       # heads_mask -> SMEM
        grid=(B, T // block_q),
        in_specs=[
            pl.BlockSpec((1, T, E), lambda b, qt, hm: (b, 0, 0)),        # hidden (bf16)
            pl.BlockSpec((1, block_q, T), lambda b, qt, hm: (b, qt, 0)), # relation mask
            const((E, 3 * E)),                                           # fused Wqkv
            const((1, 3 * E)),                                           # fused bqkv
            const((E, E)),                                               # Wo
            const((1, E)),                                               # bo
        ],
        out_specs=pl.BlockSpec((1, block_q, E), lambda b, qt, hm: (b, qt, 0)),
        scratch_shapes=[pltpu.VMEM((T, 3 * E), jnp.bfloat16)],           # fused QKV cache
    )

    return pl.pallas_call(
        kernel,
        out_shape=jax.ShapeDtypeStruct((B, T, E), jnp.float32),
        grid_spec=grid_spec,
        compiler_params=pltpu.CompilerParams(
            dimension_semantics=("parallel", "arbitrary"),
            vmem_limit_bytes=64 * 1024 * 1024,
        ),
    )(hmask, x_b, rel_bin, wqkv, bqkv, wo_b, bo_f)


def _reference(hidden_states, relation_inputs, params, num_heads):
    """Pure-JAX f32 reference mirroring the PyTorch forward (self-attn path)."""
    wq, bq, wk, bk, wv, bv, wo, bo, heads_mask = params
    B, T, E = hidden_states.shape
    D = E // num_heads
    scaling = float(D) ** -0.5

    q = (hidden_states @ wq + bq[0]) * scaling
    k = hidden_states @ wk + bk[0]
    v = hidden_states @ wv + bv[0]

    def split(x):  # (B, T, E) -> (B, H, T, D)
        return x.reshape(B, T, num_heads, D).transpose(0, 2, 1, 3)

    qh, kh, vh = split(q), split(k), split(v)
    s = jnp.einsum("bhtd,bhsd->bhts", qh, kh)
    p = jax.nn.softmax(s, axis=-1)

    rel_bin = jnp.minimum(relation_inputs, 1).astype(jnp.float32)[:, None]  # (B,1,T,T)
    m = heads_mask.reshape(1, num_heads, 1, 1)
    p = m * (rel_bin * p) + (1.0 - m) * p

    ctx = jnp.einsum("bhts,bhsd->bhtd", p, vh)
    ctx = ctx.transpose(0, 2, 1, 3).reshape(B, T, E)
    return ctx @ wo + bo[0]


if __name__ == "__main__":
    B, T, E, H = 2, 16, 32, 4   # block_q=8 -> grid (2, 2): exercises scratch reuse

    key = jax.random.PRNGKey(0)
    keys = jax.random.split(key, 12)

    hidden_states = jax.random.normal(keys[0], (B, T, E), dtype=jnp.float32)
    relation_inputs = jax.random.randint(keys[1], (B, T, T), 0, 3, dtype=jnp.int32)

    init = lambda k, shape: (0.2 * jax.random.normal(k, shape)).astype(jnp.float32)
    # Weights stored directly in (E_in, E_out) layout (== torch weight transposed).
    wq, wk, wv, wo = (init(keys[i], (E, E)) for i in range(2, 6))
    bq, bk, bv, bo = (init(keys[i], (1, E)) for i in range(6, 10))
    heads_mask = jnp.zeros((H,), jnp.float32).at[0].set(1.0)  # relation head = 0

    params = (wq, bq, wk, bk, wv, bv, wo, bo, heads_mask)

    out = bart_custom_mask_attention(hidden_states, relation_inputs, params, H, block_q=8)
    out = jax.block_until_ready(out)

    ref = _reference(hidden_states, relation_inputs, params, H)
    assert out.shape == (B, T, E)
    max_err = float(jnp.max(jnp.abs(out - ref)))
    assert jnp.allclose(out, ref, atol=5e-2, rtol=5e-2), \
        f"mismatch vs JAX reference (max abs err {max_err})"

    print("KERNEL_OK")
</pallas_src>

<mosaic_0001>
module attributes {stable_mosaic.version = 11 : i64} {
  func.func @_attn_kernel(%arg0: i32, %arg1: i32, %arg2: memref<4xf32, #tpu.memory_space<smem>>, %arg3: memref<1x16x32xbf16, #tpu.memory_space<vmem>>, %arg4: memref<1x8x16xbf16, #tpu.memory_space<vmem>>, %arg5: memref<32x96xbf16, #tpu.memory_space<vmem>>, %arg6: memref<1x96xf32, #tpu.memory_space<vmem>>, %arg7: memref<32x32xbf16, #tpu.memory_space<vmem>>, %arg8: memref<1x32xf32, #tpu.memory_space<vmem>>, %arg9: memref<1x8x32xf32, #tpu.memory_space<vmem>>, %arg10: memref<16x96xbf16, #tpu.memory_space<vmem>>) attributes {dimension_semantics = [#tpu.dimension_semantics<parallel>, #tpu.dimension_semantics<arbitrary>], iteration_bounds = array<i64: 2, 2>, scalar_prefetch = 1 : i64, scratch_operands = 1 : i64, tpu.core_type = #tpu.core_type<tc>, window_params = [{transform_indices = @transform_0, window_bounds = array<i64: 1, 16, 32>}, {transform_indices = @transform_1, window_bounds = array<i64: 1, 8, 16>}, {pipeline_mode = #tpu.pipeline_mode<synchronous>, transform_indices = @transform_2, window_bounds = array<i64: 32, 96>}, {pipeline_mode = #tpu.pipeline_mode<synchronous>, transform_indices = @transform_3, window_bounds = array<i64: 1, 96>}, {pipeline_mode = #tpu.pipeline_mode<synchronous>, transform_indices = @transform_4, window_bounds = array<i64: 32, 32>}, {pipeline_mode = #tpu.pipeline_mode<synchronous>, transform_indices = @transform_5, window_bounds = array<i64: 1, 32>}, {transform_indices = @transform_6, window_bounds = array<i64: 1, 8, 32>}]} {
    %c0_i32 = arith.constant 0 : i32
    %0 = arith.cmpi eq, %arg1, %c0_i32 : i32
    %1 = arith.extui %0 : i1 to i32
    %c0_i32_0 = arith.constant 0 : i32
    %2 = arith.cmpi ne, %1, %c0_i32_0 : i32
    scf.if %2 {
      %c0_50 = arith.constant 0 : index
      %c0_51 = arith.constant 0 : index
      %c0_52 = arith.constant 0 : index
      %129 = vector.load %arg3[%c0_50, %c0_51, %c0_52] : memref<1x16x32xbf16, #tpu.memory_space<vmem>>, vector<1x16x32xbf16>
      %130 = vector.shape_cast %129 : vector<1x16x32xbf16> to vector<16x32xbf16>
      %c0_53 = arith.constant 0 : index
      %c0_54 = arith.constant 0 : index
      %131 = vector.load %arg5[%c0_53, %c0_54] : memref<32x96xbf16, #tpu.memory_space<vmem>>, vector<32x96xbf16>
      %cst_55 = arith.constant dense<0.000000e+00> : vector<16x96xf32>
      %132 = tpu.matmul %130, %131, %cst_55 {dimension_numbers = #tpu.dot_dimension_numbers<[1], [0], [0], [1], [0, 0, 1, 1], [], []>} : vector<16x32xbf16>, vector<32x96xbf16>, vector<16x96xf32> -> vector<16x96xf32>
      %c0_56 = arith.constant 0 : index
      %c0_57 = arith.constant 0 : index
      %133 = vector.load %arg6[%c0_56, %c0_57] : memref<1x96xf32, #tpu.memory_space<vmem>>, vector<1x96xf32>
      %134 = vector.shape_cast %133 : vector<1x96xf32> to vector<96xf32>
      %135 = vector.shape_cast %134 : vector<96xf32> to vector<1x96xf32>
      %136 = vector.broadcast %135 : vector<1x96xf32> to vector<16x96xf32>
      %137 = arith.addf %132, %136 : vector<16x96xf32>
      %138 = arith.truncf %137 : vector<16x96xf32> to vector<16x96xbf16>
      %c0_58 = arith.constant 0 : index
      %c0_59 = arith.constant 0 : index
      %139 = vector.load %arg10[%c0_58, %c0_59] : memref<16x96xbf16, #tpu.memory_space<vmem>>, vector<16x96xbf16>
      tpu.vector_store %arg10[%c0_58, %c0_59], %138 {strides = array<i32>} : memref<16x96xbf16, #tpu.memory_space<vmem>>, vector<16x96xbf16>,
    } else {
    }
    %c8_i32 = arith.constant 8 : i32
    %3 = arith.muli %arg1, %c8_i32 : i32
    %4 = tpu.assume_multiple %3, 8 : i32
    %c0 = arith.constant 0 : index
    %c0_1 = arith.constant 0 : index
    %c0_2 = arith.constant 0 : index
    %5 = vector.load %arg4[%c0, %c0_1, %c0_2] : memref<1x8x16xbf16, #tpu.memory_space<vmem>>, vector<1x8x16xbf16>
    %6 = vector.shape_cast %5 : vector<1x8x16xbf16> to vector<8x16xbf16>
    %7 = arith.extf %6 : vector<8x16xbf16> to vector<8x16xf32>
    %cst = arith.constant 0.000000e+00 : f32
    %8 = vector.broadcast %cst : f32 to vector<8x32xf32>
    %9 = arith.index_cast %4 : i32 to index
    %c0_3 = arith.constant 0 : index
    %10 = vector.load %arg10[%9, %c0_3] : memref<16x96xbf16, #tpu.memory_space<vmem>>, vector<8x8xbf16>
    %c0_4 = arith.constant 0 : index
    %c32 = arith.constant 32 : index
    %11 = vector.load %arg10[%c0_4, %c32] : memref<16x96xbf16, #tpu.memory_space<vmem>>, vector<16x8xbf16>
    %c0_5 = arith.constant 0 : index
    %c64 = arith.constant 64 : index
    %12 = vector.load %arg10[%c0_5, %c64] : memref<16x96xbf16, #tpu.memory_space<vmem>>, vector<16x8xbf16>
    %cst_6 = arith.constant dense<0.000000e+00> : vector<8x16xf32>
    %13 = tpu.matmul %10, %11, %cst_6 {dimension_numbers = #tpu.dot_dimension_numbers<[1], [1], [0], [0], [0, 0, 1, 0], [], []>} : vector<8x8xbf16>, vector<16x8xbf16>, vector<8x16xf32> -> vector<8x16xf32>
    %cst_7 = arith.constant dense<0xFF800000> : vector<8xf32>
    %14 = vector.multi_reduction <maximumf>, %13, %cst_7 [1] : vector<8x16xf32> to vector<8xf32>
    %15 = vector.shape_cast %14 : vector<8xf32> to vector<8x1xf32>
    %16 = vector.broadcast %15 : vector<8x1xf32> to vector<8x16xf32>
    %17 = arith.subf %13, %16 : vector<8x16xf32>
    %18 = math.exp %17 : vector<8x16xf32>
    %cst_8 = arith.constant dense<0.000000e+00> : vector<8xf32>
    %19 = vector.multi_reduction <add>, %18, %cst_8 [1] : vector<8x16xf32> to vector<8xf32>
    %20 = vector.shape_cast %19 : vector<8xf32> to vector<8x1xf32>
    %21 = tpu.reciprocal %20 {approx = true} : vector<8x1xf32> -> vector<8x1xf32>
    %22 = vector.broadcast %21 : vector<8x1xf32> to vector<8x16xf32>
    %23 = arith.mulf %18, %22 : vector<8x16xf32>
    %c0_9 = arith.constant 0 : index
    %24 = memref.load %arg2[%c0_9] : memref<4xf32, #tpu.memory_space<smem>>
    %cst_10 = arith.constant 1.000000e+00 : f32
    %25 = arith.subf %cst_10, %24 : f32
    %26 = vector.broadcast %24 : f32 to vector<8x16xf32>
    %27 = arith.mulf %26, %7 : vector<8x16xf32>
    %28 = vector.broadcast %25 : f32 to vector<8x16xf32>
    %29 = arith.addf %28, %27 : vector<8x16xf32>
    %30 = arith.mulf %23, %29 : vector<8x16xf32>
    %31 = arith.truncf %30 : vector<8x16xf32> to vector<8x16xbf16>
    %cst_11 = arith.constant dense<0.000000e+00> : vector<8x8xf32>
    %32 = tpu.matmul %31, %12, %cst_11 {dimension_numbers = #tpu.dot_dimension_numbers<[1], [0], [0], [1], [0, 0, 1, 1], [], []>} : vector<8x16xbf16>, vector<16x8xbf16>, vector<8x8xf32> -> vector<8x8xf32>
    %c0_12 = arith.constant 0 : index
    %c0_13 = arith.constant 0 : index
    %33 = vector.load %arg7[%c0_12, %c0_13] : memref<32x32xbf16, #tpu.memory_space<vmem>>, vector<8x32xbf16>
    %34 = arith.truncf %32 : vector<8x8xf32> to vector<8x8xbf16>
    %cst_14 = arith.constant dense<0.000000e+00> : vector<8x32xf32>
    %35 = tpu.matmul %34, %33, %cst_14 {dimension_numbers = #tpu.dot_dimension_numbers<[1], [0], [0], [1], [0, 0, 1, 1], [], []>} : vector<8x8xbf16>, vector<8x32xbf16>, vector<8x32xf32> -> vector<8x32xf32>
    %36 = arith.addf %8, %35 : vector<8x32xf32>
    %37 = arith.index_cast %4 : i32 to index
    %c8 = arith.constant 8 : index
    %38 = vector.load %arg10[%37, %c8] : memref<16x96xbf16, #tpu.memory_space<vmem>>, vector<8x8xbf16>
    %c0_15 = arith.constant 0 : index
    %c40 = arith.constant 40 : index
    %39 = vector.load %arg10[%c0_15, %c40] : memref<16x96xbf16, #tpu.memory_space<vmem>>, vector<16x8xbf16>
    %c0_16 = arith.constant 0 : index
    %c72 = arith.constant 72 : index
    %40 = vector.load %arg10[%c0_16, %c72] : memref<16x96xbf16, #tpu.memory_space<vmem>>, vector<16x8xbf16>
    %cst_17 = arith.constant dense<0.000000e+00> : vector<8x16xf32>
    %41 = tpu.matmul %38, %39, %cst_17 {dimension_numbers = #tpu.dot_dimension_numbers<[1], [1], [0], [0], [0, 0, 1, 0], [], []>} : vector<8x8xbf16>, vector<16x8xbf16>, vector<8x16xf32> -> vector<8x16xf32>
    %cst_18 = arith.constant dense<0xFF800000> : vector<8xf32>
    %42 = vector.multi_reduction <maximumf>, %41, %cst_18 [1] : vector<8x16xf32> to vector<8xf32>
    %43 = vector.shape_cast %42 : vector<8xf32> to vector<8x1xf32>
    %44 = vector.broadcast %43 : vector<8x1xf32> to vector<8x16xf32>
    %45 = arith.subf %41, %44 : vector<8x16xf32>
    %46 = math.exp %45 : vector<8x16xf32>
    %cst_19 = arith.constant dense<0.000000e+00> : vector<8xf32>
    %47 = vector.multi_reduction <add>, %46, %cst_19 [1] : vector<8x16xf32> to vector<8xf32>
    %48 = vector.shape_cast %47 : vector<8xf32> to vector<8x1xf32>
    %49 = tpu.reciprocal %48 {approx = true} : vector<8x1xf32> -> vector<8x1xf32>
    %50 = vector.broadcast %49 : vector<8x1xf32> to vector<8x16xf32>
    %51 = arith.mulf %46, %50 : vector<8x16xf32>
    %c1 = arith.constant 1 : index
    %52 = memref.load %arg2[%c1] : memref<4xf32, #tpu.memory_space<smem>>
    %cst_20 = arith.constant 1.000000e+00 : f32
    %53 = arith.subf %cst_20, %52 : f32
    %54 = vector.broadcast %52 : f32 to vector<8x16xf32>
    %55 = arith.mulf %54, %7 : vector<8x16xf32>
    %56 = vector.broadcast %53 : f32 to vector<8x16xf32>
    %57 = arith.addf %56, %55 : vector<8x16xf32>
    %58 = arith.mulf %51, %57 : vector<8x16xf32>
    %59 = arith.truncf %58 : vector<8x16xf32> to vector<8x16xbf16>
    %cst_21 = arith.constant dense<0.000000e+00> : vector<8x8xf32>
    %60 = tpu.matmul %59, %40, %cst_21 {dimension_numbers = #tpu.dot_dimension_numbers<[1], [0], [0], [1], [0, 0, 1, 1], [], []>} : vector<8x16xbf16>, vector<16x8xbf16>, vector<8x8xf32> -> vector<8x8xf32>
    %c8_22 = arith.constant 8 : index
    %c0_23 = arith.constant 0 : index
    %61 = vector.load %arg7[%c8_22, %c0_23] : memref<32x32xbf16, #tpu.memory_space<vmem>>, vector<8x32xbf16>
    %62 = arith.truncf %60 : vector<8x8xf32> to vector<8x8xbf16>
    %cst_24 = arith.constant dense<0.000000e+00> : vector<8x32xf32>
    %63 = tpu.matmul %62, %61, %cst_24 {dimension_numbers = #tpu.dot_dimension_numbers<[1], [0], [0], [1], [0, 0, 1, 1], [], []>} : vector<8x8xbf16>, vector<8x32xbf16>, vector<8x32xf32> -> vector<8x32xf32>
    %64 = arith.addf %36, %63 : vector<8x32xf32>
    %65 = arith.index_cast %4 : i32 to index
    %c16 = arith.constant 16 : index
    %66 = vector.load %arg10[%65, %c16] : memref<16x96xbf16, #tpu.memory_space<vmem>>, vector<8x8xbf16>
    %c0_25 = arith.constant 0 : index
    %c48 = arith.constant 48 : index
    %67 = vector.load %arg10[%c0_25, %c48] : memref<16x96xbf16, #tpu.memory_space<vmem>>, vector<16x8xbf16>
    %c0_26 = arith.constant 0 : index
    %c80 = arith.constant 80 : index
    %68 = vector.load %arg10[%c0_26, %c80] : memref<16x96xbf16, #tpu.memory_space<vmem>>, vector<16x8xbf16>
    %cst_27 = arith.constant dense<0.000000e+00> : vector<8x16xf32>
    %69 = tpu.matmul %66, %67, %cst_27 {dimension_numbers = #tpu.dot_dimension_numbers<[1], [1], [0], [0], [0, 0, 1, 0], [], []>} : vector<8x8xbf16>, vector<16x8xbf16>, vector<8x16xf32> -> vector<8x16xf32>
    %cst_28 = arith.constant dense<0xFF800000> : vector<8xf32>
    %70 = vector.multi_reduction <maximumf>, %69, %cst_28 [1] : vector<8x16xf32> to vector<8xf32>
    %71 = vector.shape_cast %70 : vector<8xf32> to vector<8x1xf32>
    %72 = vector.broadcast %71 : vector<8x1xf32> to vector<8x16xf32>
    %73 = arith.subf %69, %72 : vector<8x16xf32>
    %74 = math.exp %73 : vector<8x16xf32>
    %cst_29 = arith.constant dense<0.000000e+00> : vector<8xf32>
    %75 = vector.multi_reduction <add>, %74, %cst_29 [1] : vector<8x16xf32> to vector<8xf32>
    %76 = vector.shape_cast %75 : vector<8xf32> to vector<8x1xf32>
    %77 = tpu.reciprocal %76 {approx = true} : vector<8x1xf32> -> vector<8x1xf32>
    %78 = vector.broadcast %77 : vector<8x1xf32> to vector<8x16xf32>
    %79 = arith.mulf %74, %78 : vector<8x16xf32>
    %c2 = arith.constant 2 : index
    %80 = memref.load %arg2[%c2] : memref<4xf32, #tpu.memory_space<smem>>
    %cst_30 = arith.constant 1.000000e+00 : f32
    %81 = arith.subf %cst_30, %80 : f32
    %82 = vector.broadcast %80 : f32 to vector<8x16xf32>
    %83 = arith.mulf %82, %7 : vector<8x16xf32>
    %84 = vector.broadcast %81 : f32 to vector<8x16xf32>
    %85 = arith.addf %84, %83 : vector<8x16xf32>
    %86 = arith.mulf %79, %85 : vector<8x16xf32>
    %87 = arith.truncf %86 : vector<8x16xf32> to vector<8x16xbf16>
    %cst_31 = arith.constant dense<0.000000e+00> : vector<8x8xf32>
    %88 = tpu.matmul %87, %68, %cst_31 {dimension_numbers = #tpu.dot_dimension_numbers<[1], [0], [0], [1], [0, 0, 1, 1], [], []>} : vector<8x16xbf16>, vector<16x8xbf16>, vector<8x8xf32> -> vector<8x8xf32>
    %c16_32 = arith.constant 16 : index
    %c0_33 = arith.constant 0 : index
    %89 = vector.load %arg7[%c16_32, %c0_33] : memref<32x32xbf16, #tpu.memory_space<vmem>>, vector<8x32xbf16>
    %90 = arith.truncf %88 : vector<8x8xf32> to vector<8x8xbf16>
    %cst_34 = arith.constant dense<0.000000e+00> : vector<8x32xf32>
    %91 = tpu.matmul %90, %89, %cst_34 {dimension_numbers = #tpu.dot_dimension_numbers<[1], [0], [0], [1], [0, 0, 1, 1], [], []>} : vector<8x8xbf16>, vector<8x32xbf16>, vector<8x32xf32> -> vector<8x32xf32>
    %92 = arith.addf %64, %91 : vector<8x32xf32>
    %93 = arith.index_cast %4 : i32 to index
    %c24 = arith.constant 24 : index
    %94 = vector.load %arg10[%93, %c24] : memref<16x96xbf16, #tpu.memory_space<vmem>>, vector<8x8xbf16>
    %c0_35 = arith.constant 0 : index
    %c56 = arith.constant 56 : index
    %95 = vector.load %arg10[%c0_35, %c56] : memref<16x96xbf16, #tpu.memory_space<vmem>>, vector<16x8xbf16>
    %c0_36 = arith.constant 0 : index
    %c88 = arith.constant 88 : index
    %96 = vector.load %arg10[%c0_36, %c88] : memref<16x96xbf16, #tpu.memory_space<vmem>>, vector<16x8xbf16>
    %cst_37 = arith.constant dense<0.000000e+00> : vector<8x16xf32>
    %97 = tpu.matmul %94, %95, %cst_37 {dimension_numbers = #tpu.dot_dimension_numbers<[1], [1], [0], [0], [0, 0, 1, 0], [], []>} : vector<8x8xbf16>, vector<16x8xbf16>, vector<8x16xf32> -> vector<8x16xf32>
    %cst_38 = arith.constant dense<0xFF800000> : vector<8xf32>
    %98 = vector.multi_reduction <maximumf>, %97, %cst_38 [1] : vector<8x16xf32> to vector<8xf32>
    %99 = vector.shape_cast %98 : vector<8xf32> to vector<8x1xf32>
    %100 = vector.broadcast %99 : vector<8x1xf32> to vector<8x16xf32>
    %101 = arith.subf %97, %100 : vector<8x16xf32>
    %102 = math.exp %101 : vector<8x16xf32>
    %cst_39 = arith.constant dense<0.000000e+00> : vector<8xf32>
    %103 = vector.multi_reduction <add>, %102, %cst_39 [1] : vector<8x16xf32> to vector<8xf32>
    %104 = vector.shape_cast %103 : vector<8xf32> to vector<8x1xf32>
    %105 = tpu.reciprocal %104 {approx = true} : vector<8x1xf32> -> vector<8x1xf32>
    %106 = vector.broadcast %105 : vector<8x1xf32> to vector<8x16xf32>
    %107 = arith.mulf %102, %106 : vector<8x16xf32>
    %c3 = arith.constant 3 : index
    %108 = memref.load %arg2[%c3] : memref<4xf32, #tpu.memory_space<smem>>
    %cst_40 = arith.constant 1.000000e+00 : f32
    %109 = arith.subf %cst_40, %108 : f32
    %110 = vector.broadcast %108 : f32 to vector<8x16xf32>
    %111 = arith.mulf %110, %7 : vector<8x16xf32>
    %112 = vector.broadcast %109 : f32 to vector<8x16xf32>
    %113 = arith.addf %112, %111 : vector<8x16xf32>
    %114 = arith.mulf %107, %113 : vector<8x16xf32>
    %115 = arith.truncf %114 : vector<8x16xf32> to vector<8x16xbf16>
    %cst_41 = arith.constant dense<0.000000e+00> : vector<8x8xf32>
    %116 = tpu.matmul %115, %96, %cst_41 {dimension_numbers = #tpu.dot_dimension_numbers<[1], [0], [0], [1], [0, 0, 1, 1], [], []>} : vector<8x16xbf16>, vector<16x8xbf16>, vector<8x8xf32> -> vector<8x8xf32>
    %c24_42 = arith.constant 24 : index
    %c0_43 = arith.constant 0 : index
    %117 = vector.load %arg7[%c24_42, %c0_43] : memref<32x32xbf16, #tpu.memory_space<vmem>>, vector<8x32xbf16>
    %118 = arith.truncf %116 : vector<8x8xf32> to vector<8x8xbf16>
    %cst_44 = arith.constant dense<0.000000e+00> : vector<8x32xf32>
    %119 = tpu.matmul %118, %117, %cst_44 {dimension_numbers = #tpu.dot_dimension_numbers<[1], [0], [0], [1], [0, 0, 1, 1], [], []>} : vector<8x8xbf16>, vector<8x32xbf16>, vector<8x32xf32> -> vector<8x32xf32>
    %120 = arith.addf %92, %119 : vector<8x32xf32>
    %c0_45 = arith.constant 0 : index
    %c0_46 = arith.constant 0 : index
    %121 = vector.load %arg8[%c0_45, %c0_46] : memref<1x32xf32, #tpu.memory_space<vmem>>, vector<1x32xf32>
    %122 = vector.shape_cast %121 : vector<1x32xf32> to vector<32xf32>
    %123 = vector.shape_cast %122 : vector<32xf32> to vector<1x32xf32>
    %124 = vector.broadcast %123 : vector<1x32xf32> to vector<8x32xf32>
    %125 = arith.addf %120, %124 : vector<8x32xf32>
    %c0_47 = arith.constant 0 : index
    %c0_48 = arith.constant 0 : index
    %c0_49 = arith.constant 0 : index
    %126 = vector.load %arg9[%c0_47, %c0_48, %c0_49] : memref<1x8x32xf32, #tpu.memory_space<vmem>>, vector<1x8x32xf32>
    %127 = vector.shape_cast %126 : vector<1x8x32xf32> to vector<8x32xf32>
    %128 = vector.shape_cast %125 : vector<8x32xf32> to vector<1x8x32xf32>
    tpu.vector_store %arg9[%c0_47, %c0_48, %c0_49], %128 {strides = array<i32>} : memref<1x8x32xf32, #tpu.memory_space<vmem>>, vector<1x8x32xf32>,
    return
  }
  func.func @transform_0(%arg0: i32, %arg1: i32, %arg2: memref<4xf32, #tpu.memory_space<smem>>) -> (i32, i32, i32) {
    %c0_i32 = arith.constant 0 : i32
    %c0_i32_0 = arith.constant 0 : i32
    %c0_i32_1 = arith.constant 0 : i32
    return %arg0, %c0_i32, %c0_i32_0 : i32, i32, i32
  }
  func.func @transform_1(%arg0: i32, %arg1: i32, %arg2: memref<4xf32, #tpu.memory_space<smem>>) -> (i32, i32, i32) {
    %c0_i32 = arith.constant 0 : i32
    %c0_i32_0 = arith.constant 0 : i32
    return %arg0, %arg1, %c0_i32 : i32, i32, i32
  }
  func.func @transform_2(%arg0: i32, %arg1: i32, %arg2: memref<4xf32, #tpu.memory_space<smem>>) -> (i32, i32) {
    %c0_i32 = arith.constant 0 : i32
    %c0_i32_0 = arith.constant 0 : i32
    %c0_i32_1 = arith.constant 0 : i32
    return %c0_i32, %c0_i32_0 : i32, i32
  }
  func.func @transform_3(%arg0: i32, %arg1: i32, %arg2: memref<4xf32, #tpu.memory_space<smem>>) -> (i32, i32) {
    %c0_i32 = arith.constant 0 : i32
    %c0_i32_0 = arith.constant 0 : i32
    %c0_i32_1 = arith.constant 0 : i32
    return %c0_i32, %c0_i32_0 : i32, i32
  }
  func.func @transform_4(%arg0: i32, %arg1: i32, %arg2: memref<4xf32, #tpu.memory_space<smem>>) -> (i32, i32) {
    %c0_i32 = arith.constant 0 : i32
    %c0_i32_0 = arith.constant 0 : i32
    %c0_i32_1 = arith.constant 0 : i32
    return %c0_i32, %c0_i32_0 : i32, i32
  }
  func.func @transform_5(%arg0: i32, %arg1: i32, %arg2: memref<4xf32, #tpu.memory_space<smem>>) -> (i32, i32) {
    %c0_i32 = arith.constant 0 : i32
    %c0_i32_0 = arith.constant 0 : i32
    %c0_i32_1 = arith.constant 0 : i32
    return %c0_i32, %c0_i32_0 : i32, i32
  }
  func.func @transform_6(%arg0: i32, %arg1: i32, %arg2: memref<4xf32, #tpu.memory_space<smem>>) -> (i32, i32, i32) {
    %c0_i32 = arith.constant 0 : i32
    %c0_i32_0 = arith.constant 0 : i32
    return %arg0, %arg1, %c0_i32 : i32, i32, i32
  }
}

</mosaic_0001>

<llo_original>
// kernel: tpu_custom_call.1
$region0: #{tpu_custom_call.1}
  #allocation0 [shape = 'u32[]', space=smem, size = 0x4, offset = 0x4, fixed_abs, tag = 'smem constant byte address 0x4 - core index']
  #allocation1 [shape = 'u32[72,128]{1,0:T(1,128)}', space=vmem, size = 0x9000, scoped, tag = 'internal scratch']
  #allocation2 [shape = 'bf16[16,96]{1,0:T(8,128)(2,1)}', space=vmem, size = 0x1000, scoped, tag = 'scratch operand']
  #allocation3 [shape = 's32[1]{0}', space=sflag, size = 0x4, scoped, tag = 'scoped memory for tpu_custom_call.1']
  #allocation4 [shape = 'u8[512]{0}', space=smem, size = 0x200, scoped, tag = 'prefetched SMEM operand 0']
  %s0 = inlined_call_operand.hbm [shape: f32[4], index: 0, kind: input, shape index: {}]
  %s1 = inlined_call_operand.hbm [shape: bf16[2,16,32], index: 1, kind: input, shape index: {}]
  %s2 = inlined_call_operand.hbm [shape: bf16[2,16,16], index: 2, kind: input, shape index: {}]
  %s3 = inlined_call_operand.hbm [shape: bf16[32,96], index: 3, kind: input, shape index: {}]
  %s4 = inlined_call_operand.vmem [shape: f32[1,96], index: 4, kind: input, shape index: {}]
  %s5 = inlined_call_operand.hbm [shape: bf16[32,32], index: 5, kind: input, shape index: {}]
  %s6 = inlined_call_operand.vmem [shape: f32[1,32], index: 6, kind: input, shape index: {}]
  %s7 = inlined_call_operand.hbm [shape: f32[2,16,32], index: 7, kind: output, shape index: {}]
  %s8 = sld [smem:[#allocation0]]
  $region77: #{tpu_custom_call.1} parent=0
    _
  %s10 = ssub.s32 1, %s8
  %s11 = scalar_select 0, %s10, %s8
  %s13 = sshll.u32 %s0, 4
  %s14 = int_to_ptr.hbm [resolvable:$true] %s13
  %16 = dma.hbm_to_smem %s14, 16, [#allocation4], [#allocation3]
  %18 = dma.done [#allocation3], 16
  %19 = sfence
  $region1: #{tpu_custom_call.1} parent=0
    #allocation5 [shape = 'u8[8192]{0}', space=vmem, size = 0x2000, scoped, tag = 'input window, operand 1']
    #allocation6 [shape = 's32[2]{0}', space=sflag, size = 0x8, scoped, tag = 'scoped memory for tpu_custom_call.1']
    #allocation7 [shape = 's32[2]{0}', space=sflag, size = 0x8, scoped, tag = 'scoped memory for tpu_custom_call.1']
    #allocation8 [shape = 'u8[4096]{0}', space=vmem, size = 0x1000, scoped, tag = 'input window, operand 2']
    #allocation9 [shape = 's32[2]{0}', space=sflag, size = 0x8, scoped, tag = 'scoped memory for tpu_custom_call.1']
    #allocation10 [shape = 'u8[8192]{0}', space=vmem, size = 0x2000, scoped, tag = 'input window, operand 3, single buffered']
    #allocation11 [shape = 'u8[8192]{0}', space=vmem, size = 0x2000, scoped, tag = 'input window, operand 5, single buffered']
    #allocation12 [shape = 's32[1]{0}', space=sflag, size = 0x4, scoped, tag = 'scoped memory for tpu_custom_call.1']
    #allocation13 [shape = 'u8[8192]{0}', space=vmem, size = 0x2000, scoped, tag = 'output window, operand 0']
    %20 = vsyncpa [#allocation6], 0
    %s21 = scalar_lea.sflag [#allocation6], 1
    %22 = vsyncpa %s21, 0
    %23 = vsyncpa [#allocation9], 0
    %s24 = scalar_lea.sflag [#allocation9], 1
    %25 = vsyncpa %s24, 0
    %26 = vsyncpa [#allocation12], 0
    %27 = vsyncpa [#allocation7], 0
    %s28 = scalar_lea.sflag [#allocation7], 1
    %29 = vsyncpa %s28, 0
    loop: start=0, step=1, limit=6
    $region2: #{tpu_custom_call.1} parent=1 // loop_pre_header
      _
    $region3: #{tpu_custom_call.1} parent=1 // loop_header
      %s31 = sphi 0, %s35
      %p32 = scmp.ge.s32.totalorder %s31, 6
      %s38 = sphi 0, %s50
      %s39 = sphi 0, %s46
      %s40 = sphi 0, %s38
      %s41 = sphi 0, %s39
      %s42 = sphi 0, %s40
      %s43 = sphi 0, %s41
      %s53 = sphi 0, %s55
      %s56 = sphi 0, %s53
      %s57 = sphi 0, %s56
      %s73 = sphi 0, %s57
      %s81 = sphi 0, %s83
      %s84 = sphi 0, %s81
      %s85 = sphi 0, %s84
      %s101 = sphi 0, %s85
      %s105 = sphi 0, %s105
      %s107 = sphi 0, %s105
      %s108 = sphi 0, %s107
      %s122 = sphi 0, %s108
      %s126 = sphi 0, %s126
      %s128 = sphi 0, %s126
      %s129 = sphi 0, %s128
      %s143 = sphi 0, %s129
      %s147 = sphi 0, %s147
      %s149 = sphi 0, %s147
      %s150 = sphi 0, %s149
      %s164 = sphi 0, %s150
      %s168 = sphi 0, %s168
      %s170 = sphi 0, %s168
      %s171 = sphi 0, %s170
      %s185 = sphi 0, %s171
      %s193 = sphi 0, %s195
      %s196 = sphi 0, %s193
      %s197 = sphi 0, %s196
      %s213 = sphi 0, %s197
    $region4: #{tpu_custom_call.1} parent=1 // loop_header_branch
      %34 = sbr.rel (%p32) target = $region8
    $region5: #{tpu_custom_call.1} parent=1 // loop_body
      %s36 = ssub.s32 %s31, 1
      %s37 = ssub.s32 %s31, 2
      %s44 = sadd.s32 1, %s39
      %p45 = scmp.ge.s32.totalorder %s44, 2
      %s46 = scalar_select %p45, 0, %s44
      %s47 = sadd.s32 1, %s38
      %s48 = scalar_select %p45, %s47, %s38
      %p49 = scmp.ge.s32.totalorder %s48, 2
      %s50 = scalar_select %p49, 0, %s48
      %s51 = ssub.s32 %s38, %s50
      %p52 = scmp.eq.s32.totalorder %s51, 0
      %s54 = sadd.s32 %s53, 1
      %s55 = scalar_select %p52, %s53, %s54
      %p58 = pneg %p52
      %p59 = scmp.eq.s32.totalorder %s31, 3
      %p60 = por %p58, %p59
      %p61 = scmp.ne.s32.totalorder %s53, %s56
      %p62 = scmp.eq.s32.totalorder %s31, 0
      %p63 = por %p61, %p62
      %p64 = scmp.ne.s32.totalorder %s53, %s56
      %p65 = scmp.eq.s32.totalorder %s36, 3
      %p66 = por %p64, %p65
      %p67 = scmp.ne.s32.totalorder %s56, %s57
      %p68 = scmp.eq.s32.totalorder %s36, 0
      %p69 = por %p67, %p68
      %p70 = scmp.ne.s32.totalorder %s56, %s57
      %p71 = scmp.eq.s32.totalorder %s37, 3
      %p72 = por %p70, %p71
      %p74 = scmp.ne.s32.totalorder %s57, %s73
      %p75 = scmp.eq.s32.totalorder %s37, 0
      %p76 = por %p74, %p75
      %s77 = ssub.s32 %s38, %s50
      %s78 = ssub.s32 %s39, %s46
      %s79 = sor.u32 %s77, %s78
      %p80 = scmp.eq.s32.totalorder %s79, 0
      %s82 = sadd.s32 %s81, 1
      %s83 = scalar_select %p80, %s81, %s82
      %p86 = pneg %p80
      %p87 = scmp.eq.s32.totalorder %s31, 3
      %p88 = por %p86, %p87
      %p89 = scmp.ne.s32.totalorder %s81, %s84
      %p90 = scmp.eq.s32.totalorder %s31, 0
      %p91 = por %p89, %p90
      %p92 = scmp.ne.s32.totalorder %s81, %s84
      %p93 = scmp.eq.s32.totalorder %s36, 3
      %p94 = por %p92, %p93
      %p95 = scmp.ne.s32.totalorder %s84, %s85
      %p96 = scmp.eq.s32.totalorder %s36, 0
      %p97 = por %p95, %p96
      %p98 = scmp.ne.s32.totalorder %s84, %s85
      %p99 = scmp.eq.s32.totalorder %s37, 3
      %p100 = por %p98, %p99
      %p102 = scmp.ne.s32.totalorder %s85, %s101
      %p103 = scmp.eq.s32.totalorder %s37, 0
      %p104 = por %p102, %p103
      %s106 = sadd.s32 %s105, 1
      %p109 = scmp.eq.s32.totalorder %s31, 3
      %p110 = scmp.ne.s32.totalorder %s105, %s107
      %p111 = scmp.eq.s32.totalorder %s31, 0
      %p112 = por %p110, %p111
      %p113 = scmp.ne.s32.totalorder %s105, %s107
      %p114 = scmp.eq.s32.totalorder %s36, 3
      %p115 = por %p113, %p114
      %p116 = scmp.ne.s32.totalorder %s107, %s108
      %p117 = scmp.eq.s32.totalorder %s36, 0
      %p118 = por %p116, %p117
      %p119 = scmp.ne.s32.totalorder %s107, %s108
      %p120 = scmp.eq.s32.totalorder %s37, 3
      %p121 = por %p119, %p120
      %p123 = scmp.ne.s32.totalorder %s108, %s122
      %p124 = scmp.eq.s32.totalorder %s37, 0
      %p125 = por %p123, %p124
      %s127 = sadd.s32 %s126, 1
      %p130 = scmp.eq.s32.totalorder %s31, 3
      %p131 = scmp.ne.s32.totalorder %s126, %s128
      %p132 = scmp.eq.s32.totalorder %s31, 0
      %p133 = por %p131, %p132
      %p134 = scmp.ne.s32.totalorder %s126, %s128
      %p135 = scmp.eq.s32.totalorder %s36, 3
      %p136 = por %p134, %p135
      %p137 = scmp.ne.s32.totalorder %s128, %s129
      %p138 = scmp.eq.s32.totalorder %s36, 0
      %p139 = por %p137, %p138
      %p140 = scmp.ne.s32.totalorder %s128, %s129
      %p141 = scmp.eq.s32.totalorder %s37, 3
      %p142 = por %p140, %p141
      %p144 = scmp.ne.s32.totalorder %s129, %s143
      %p145 = scmp.eq.s32.totalorder %s37, 0
      %p146 = por %p144, %p145
      %s148 = sadd.s32 %s147, 1
      %p151 = scmp.eq.s32.totalorder %s31, 3
      %p152 = scmp.ne.s32.totalorder %s147, %s149
      %p153 = scmp.eq.s32.totalorder %s31, 0
      %p154 = por %p152, %p153
      %p155 = scmp.ne.s32.totalorder %s147, %s149
      %p156 = scmp.eq.s32.totalorder %s36, 3
      %p157 = por %p155, %p156
      %p158 = scmp.ne.s32.totalorder %s149, %s150
      %p159 = scmp.eq.s32.totalorder %s36, 0
      %p160 = por %p158, %p159
      %p161 = scmp.ne.s32.totalorder %s149, %s150
      %p162 = scmp.eq.s32.totalorder %s37, 3
      %p163 = por %p161, %p162
      %p165 = scmp.ne.s32.totalorder %s150, %s164
      %p166 = scmp.eq.s32.totalorder %s37, 0
      %p167 = por %p165, %p166
      %s169 = sadd.s32 %s168, 1
      %p172 = scmp.eq.s32.totalorder %s31, 3
      %p173 = scmp.ne.s32.totalorder %s168, %s170
      %p174 = scmp.eq.s32.totalorder %s31, 0
      %p175 = por %p173, %p174
      %p176 = scmp.ne.s32.totalorder %s168, %s170
      %p177 = scmp.eq.s32.totalorder %s36, 3
      %p178 = por %p176, %p177
      %p179 = scmp.ne.s32.totalorder %s170, %s171
      %p180 = scmp.eq.s32.totalorder %s36, 0
      %p181 = por %p179, %p180
      %p182 = scmp.ne.s32.totalorder %s170, %s171
      %p183 = scmp.eq.s32.totalorder %s37, 3
      %p184 = por %p182, %p183
      %p186 = scmp.ne.s32.totalorder %s171, %s185
      %p187 = scmp.eq.s32.totalorder %s37, 0
      %p188 = por %p186, %p187
      %s189 = ssub.s32 %s38, %s50
      %s190 = ssub.s32 %s39, %s46
      %s191 = sor.u32 %s189, %s190
      %p192 = scmp.eq.s32.totalorder %s191, 0
      %s194 = sadd.s32 %s193, 1
      %s195 = scalar_select %p192, %s193, %s194
      %p198 = pneg %p192
      %p199 = scmp.eq.s32.totalorder %s31, 3
      %p200 = por %p198, %p199
      %p201 = scmp.ne.s32.totalorder %s193, %s196
      %p202 = scmp.eq.s32.totalorder %s31, 0
      %p203 = por %p201, %p202
      %p204 = scmp.ne.s32.totalorder %s193, %s196
      %p205 = scmp.eq.s32.totalorder %s36, 3
      %p206 = por %p204, %p205
      %p207 = scmp.ne.s32.totalorder %s196, %s197
      %p208 = scmp.eq.s32.totalorder %s36, 0
      %p209 = por %p207, %p208
      %p210 = scmp.ne.s32.totalorder %s196, %s197
      %p211 = scmp.eq.s32.totalorder %s37, 3
      %p212 = por %p210, %p211
      %p214 = scmp.ne.s32.totalorder %s197, %s213
      %p215 = scmp.eq.s32.totalorder %s37, 0
      %p216 = por %p214, %p215
      %p217 = scmp.le.s32.totalorder 1, %s31
      %p218 = scmp.lt.s32.totalorder %s31, 5
      %p219 = pnand %p217, %p218
      %p220 = pneg %p219
      // Predicated region
      $region9: #{tpu_custom_call.1} parent=5 // pred_check
        _
      $region10: #{tpu_custom_call.1} parent=5 // pred_check_branch
        %222 = sbr.rel (%p219) target = $region12
      $region11: #{tpu_custom_call.1} parent=5 // pred_region
        %s223 = ssub.s32 %s31, 1
        // Predicated region
        $region13: #{tpu_custom_call.1} parent=11 // pred_check
          %p224 = pneg %p118
        $region14: #{tpu_custom_call.1} parent=11 // pred_check_branch
          %226 = sbr.rel (%p224) target = $region16
        $region15: #{tpu_custom_call.1} parent=11 // pred_region
          %228 = vsyncadd [#allocation9], 0
          %s229 = sshll.u32 %s3, 4
          %s230 = int_to_ptr.hbm [resolvable:$true] %s229
          %s231 = sshll.u32 [#allocation10], 4
          %s232 = int_to_ptr.vmem [resolvable:$true] %s231
          %237 = dma.hbm_to_vmem [thread:$0]  %s230, 256, %s232, [#allocation9], 64, 64, 4
        $region16: #{tpu_custom_call.1} parent=11 // pred_fallthru
          _
        // Predicated region
        $region17: #{tpu_custom_call.1} parent=11 // pred_check
          %p238 = pneg %p139
        $region18: #{tpu_custom_call.1} parent=11 // pred_check_branch
          %240 = sbr.rel (%p238) target = $region20
        $region19: #{tpu_custom_call.1} parent=11 // pred_region
          _
        $region20: #{tpu_custom_call.1} parent=11 // pred_fallthru
          _
        // Predicated region
        $region21: #{tpu_custom_call.1} parent=11 // pred_check
          %p241 = pneg %p160
        $region22: #{tpu_custom_call.1} parent=11 // pred_check_branch
          %243 = sbr.rel (%p241) target = $region24
        $region23: #{tpu_custom_call.1} parent=11 // pred_region
          %245 = vsyncadd [#allocation12], 0
          %s246 = sshll.u32 %s5, 4
          %s247 = int_to_ptr.hbm [resolvable:$true] %s246
          %s248 = sshll.u32 [#allocation11], 4
          %s249 = int_to_ptr.vmem [resolvable:$true] %s248
          %254 = dma.hbm_to_vmem [thread:$0]  %s247, 256, %s249, [#allocation12], 64, 64, 4
        $region24: #{tpu_custom_call.1} parent=11 // pred_fallthru
          _
        // Predicated region
        $region25: #{tpu_custom_call.1} parent=11 // pred_check
          %p255 = pneg %p181
        $region26: #{tpu_custom_call.1} parent=11 // pred_check_branch
          %257 = sbr.rel (%p255) target = $region28
        $region27: #{tpu_custom_call.1} parent=11 // pred_region
          _
        $region28: #{tpu_custom_call.1} parent=11 // pred_fallthru
          _
      $region12: #{tpu_custom_call.1} parent=5 // pred_fallthru
        _
      %p258 = scmp.lt.s32.totalorder %s31, 4
      // Predicated region
      $region29: #{tpu_custom_call.1} parent=5 // pred_check
        %p259 = pneg %p258
      $region30: #{tpu_custom_call.1} parent=5 // pred_check_branch
        %261 = sbr.rel (%p259) target = $region32
      $region31: #{tpu_custom_call.1} parent=5 // pred_region
        // Predicated region
        $region33: #{tpu_custom_call.1} parent=31 // pred_check
          %p262 = pneg %p63
        $region34: #{tpu_custom_call.1} parent=31 // pred_check_branch
          %264 = sbr.rel (%p262) target = $region36
        $region35: #{tpu_custom_call.1} parent=31 // pred_region
          %s265 = sand.u32 %s53, 1
          %s266 = scalar_lea.sflag [#allocation6], %s265
          %s267 = sand.u32 %s53, 1
          %s268 = smul.addr %s267, 8
          %s269 = scalar_lea.vmem [#allocation5], %s268
          %271 = vsyncadd %s266, 0
          %s272 = smul.addr %s38, 2
          %s273 = smul.addr %s272, 4
          %s274 = scalar_lea.hbm %s1, %s273
          %s275 = sshll.u32 %s274, 4
          %s276 = int_to_ptr.hbm [resolvable:$true] %s275
          %s277 = sshll.u32 %s269, 4
          %s278 = int_to_ptr.vmem [resolvable:$true] %s277
          %283 = dma.hbm_to_vmem [thread:$0]  %s276, 128, %s278, %s266, 64, 64, 4
        $region36: #{tpu_custom_call.1} parent=31 // pred_fallthru
          _
        // Predicated region
        $region37: #{tpu_custom_call.1} parent=31 // pred_check
          %p284 = pneg %p91
        $region38: #{tpu_custom_call.1} parent=31 // pred_check_branch
          %286 = sbr.rel (%p284) target = $region40
        $region39: #{tpu_custom_call.1} parent=31 // pred_region
          %s287 = sand.u32 %s31, 1
          %s288 = scalar_lea.sflag [#allocation9], %s287
          %s289 = sand.u32 %s81, 1
          %s290 = smul.addr %s289, 4
          %s291 = scalar_lea.vmem [#allocation8], %s290
          %293 = vsyncadd %s288, 0
          %s294 = smul.addr %s38, 2
          %s295 = sadd.s32 %s39, %s294
          %s296 = smul.addr %s295, 4
          %s297 = scalar_lea.hbm %s2, %s296
          %s299 = sshll.u32 %s297, 4
          %s300 = int_to_ptr.hbm [resolvable:$true] %s299
          %s301 = sshll.u32 %s291, 4
          %s302 = int_to_ptr.vmem [resolvable:$true] %s301
          %304 = dma.hbm_to_vmem [thread:$0]  %s300, 64, %s302, %s288
        $region40: #{tpu_custom_call.1} parent=31 // pred_fallthru
          _
      $region32: #{tpu_custom_call.1} parent=5 // pred_fallthru
        _
      %p305 = scmp.le.s32.totalorder 1, %s31
      %p306 = scmp.lt.s32.totalorder %s31, 5
      %p307 = pnand %p305, %p306
      %p308 = pneg %p307
      // Predicated region
      $region41: #{tpu_custom_call.1} parent=5 // pred_check
        _
      $region42: #{tpu_custom_call.1} parent=5 // pred_check_branch
        %310 = sbr.rel (%p307) target = $region44
      $region43: #{tpu_custom_call.1} parent=5 // pred_region
        %s311 = ssub.s32 %s31, 1
        %s312 = sand.u32 %s56, 1
        %s313 = scalar_lea.sflag [#allocation6], %s312
        %s314 = sand.u32 %s56, 1
        %s315 = smul.addr %s314, 8
        %s316 = scalar_lea.vmem [#allocation5], %s315
        // Predicated region
        $region45: #{tpu_custom_call.1} parent=43 // pred_check
          %p317 = pneg %p69
        $region46: #{tpu_custom_call.1} parent=43 // pred_check_branch
          %319 = sbr.rel (%p317) target = $region48
        $region47: #{tpu_custom_call.1} parent=43 // pred_region
          %321 = dma.done %s313, 128
        $region48: #{tpu_custom_call.1} parent=43 // pred_fallthru
          _
        %s322 = sand.u32 %s36, 1
        %s323 = scalar_lea.sflag [#allocation9], %s322
        %s324 = sand.u32 %s84, 1
        %s325 = smul.addr %s324, 4
        %s326 = scalar_lea.vmem [#allocation8], %s325
        // Predicated region
        $region49: #{tpu_custom_call.1} parent=43 // pred_check
          %p327 = pneg %p97
        $region50: #{tpu_custom_call.1} parent=43 // pred_check_branch
          %329 = sbr.rel (%p327) target = $region52
        $region51: #{tpu_custom_call.1} parent=43 // pred_region
          %331 = dma.done %s323, 64
        $region52: #{tpu_custom_call.1} parent=43 // pred_fallthru
          _
        // Predicated region
        $region53: #{tpu_custom_call.1} parent=43 // pred_check
          %p332 = pneg %p118
        $region54: #{tpu_custom_call.1} parent=43 // pred_check_branch
          %334 = sbr.rel (%p332) target = $region56
        $region55: #{tpu_custom_call.1} parent=43 // pred_region
          %336 = dma.done [#allocation9], 256
        $region56: #{tpu_custom_call.1} parent=43 // pred_fallthru
          _
        // Predicated region
        $region57: #{tpu_custom_call.1} parent=43 // pred_check
          %p337 = pneg %p160
        $region58: #{tpu_custom_call.1} parent=43 // pred_check_branch
          %339 = sbr.rel (%p337) target = $region60
        $region59: #{tpu_custom_call.1} parent=43 // pred_region
          %341 = dma.done [#allocation12], 256
        $region60: #{tpu_custom_call.1} parent=43 // pred_fallthru
          _
        %s342 = sand.u32 %s56, 1
        %s343 = scalar_lea.sflag [#allocation6], %s342
        %s344 = sand.u32 %s56, 1
        %s345 = smul.addr %s344, 8
        %s346 = scalar_lea.vmem [#allocation5], %s345
        %p347 = pneg %p69
        %p348 = pneg %p66
        %s349 = sand.u32 %s36, 1
        %s350 = scalar_lea.sflag [#allocation9], %s349
        %s351 = sand.u32 %s84, 1
        %s352 = smul.addr %s351, 4
        %s353 = scalar_lea.vmem [#allocation8], %s352
        %p354 = pneg %p97
        %p355 = pneg %p94
        %p356 = pneg %p118
        %p357 = pneg %p115
        %p358 = pneg %p139
        %p359 = pneg %p136
        %p360 = pneg %p160
        %p361 = pneg %p157
        %p362 = pneg %p181
        %p363 = pneg %p178
        %p364 = pneg %p209
        %p365 = pneg %p206
        %s366 = sand.u32 %s196, 1
        %s367 = scalar_lea.sflag [#allocation7], %s366
        %s368 = sand.u32 %s196, 1
        %s369 = smul.addr %s368, 8
        %s370 = scalar_lea.vmem [#allocation13], %s369
        %p372 = scmp.eq.s32.totalorder %s41, 0
        // Predicated region
        $region61: #{tpu_custom_call.1} parent=43 // pred_check
          %p373 = pneg %p372
        $region62: #{tpu_custom_call.1} parent=43 // pred_check_branch
          %375 = sbr.rel (%p373) target = $region64
        $region63: #{tpu_custom_call.1} parent=43 // pred_region
          %v376 = vld [vmem:[%s316] sm:$0xf]
          %v377 = vld [vmem:[%s316 + $0x4] sm:$0xf]
          %v378 = vld [vmem:[#allocation10] sm:$0xf]
          %v379 = vld [vmem:[#allocation10 + $0x4] sm:$0xf]
          %v380 = vld [vmem:[#allocation10 + $0x8] sm:$0xf]
          %v381 = vld [vmem:[#allocation10 + $0xc] sm:$0xf]
          %v382 = vld [vmem:[%s4] sm:$0x1]
          %v384 = vperm.slane %v382, 0
          %v388 = vunpack.c.l.b16 %v376
          %v389 = vunpack.c.l.b16 %v377
          %v390 = vpack.c.b16 %v389, %v388
          %v395 = vunpack.c.l.b16 %v378
          %v396 = vunpack.c.l.b16 %v379
          %v397 = vunpack.c.l.b16 %v380
          %v398 = vunpack.c.l.b16 %v381
          %v399 = vpack.c.b16 %v396, %v395
          %v400 = vpack.c.b16 %v398, %v397
          %vm403 = vcmask 261120
          %v405 = vsel %vm403, %v390, 0
          %407 = vmatpush.bf16.msra.mxu0 0
          %408 = vmatpush.bf16.msra.mxu0 0
          %409 = vmatpush.bf16.msra.mxu0 0
          %410 = vmatpush.bf16.msra.mxu0 0
          %411 = vmatpush.bf16.msra.mxu0 0
          %412 = vmatpush.bf16.msra.mxu0 0
          %413 = vmatpush.bf16.msra.mxu0 %v400
          %414 = vmatpush.bf16.msra.mxu0 %v399
          %415 = vmatmul.bf16.gmra.mxu0 %v405
          %v416 = vpop.f32.mrf.mxu0
          %v417 = vadd.f32 %v384, %v416
          %v418 = vpop.f32.mrf.mxu0
          %v419 = vadd.f32 %v384, %v418
          %420 = vdwg.mxu0
          %v421 = vpack.c.bf16 %v417, %v417
          %v422 = vpack.c.bf16 %v419, %v419
          %vm423 = vcmask 781312
          %424 = vst.msk [vmem:[#allocation2] sm:$0xf] %vm423, %v421
          %425 = vst.msk [vmem:[#allocation2 + $0x4] sm:$0xf] %vm423, %v422
        $region64: #{tpu_custom_call.1} parent=43 // pred_fallthru
          _
        %s426 = smul.u32 %s41, 8
        %v427 = vld [vmem:[%s326] sm:$0xf]
        %v428 = vunpack.c.l.bf16 %v427
        %s429 = sshra.s32 %s426, 3
        %s430 = sand.u32 %s426, 7
        %s431 = smul.addr %s429, 4
        %s432 = scalar_lea.vmem [#allocation2], %s431
        %v433 = vld [vmem:[%s432] sm:$0xf]
        %v434 = vld [vmem:[#allocation2] sm:$0xf]
        %v435 = vld [vmem:[#allocation2 + $0x4] sm:$0xf]
        %v438 = vunpack.c.l.b16 %v434
        %v439 = vunpack.c.l.b16 %v435
        %v440 = vpack.c.b16 %v439, %v438
        %441 = vrot.lane.b32.xlu0 %v440, 96
        %v442 = vpop.permute.xlu0 %441
        %vm443 = vcmask 64512
        %v445 = vsel %vm443, %v433, 0
        %v448 = vsel %vm443, %v442, 0
        %450 = vmatpush.bf16.xpose.msra.mxu0 0
        %451 = vmatpush.bf16.xpose.msra.mxu0 0
        %452 = vmatpush.bf16.xpose.msra.mxu0 0
        %453 = vmatpush.bf16.xpose.msra.mxu0 0
        %454 = vmatpush.bf16.xpose.msra.mxu0 0
        %455 = vmatpush.bf16.xpose.msra.mxu0 0
        %456 = vmatpush.bf16.xpose.msra.mxu0 0
        %457 = vmatpush.bf16.xpose.msra.mxu0 %v448
        %458 = vmatmul.bf16.gmra.mxu0 %v445
        %v459 = vpop.f32.mrf.mxu0
        %v460 = vadd.f32 0.0, %v459
        %v461 = vpop.f32.mrf.mxu0
        %462 = vdwg.mxu0
        %vm463 = vcmask 130048
        %v464 = vsel %vm463, %v460, -inf
        %465 = vmax.xlane.f32.xlu0 %v464
        %v466 = vpop.xlane.xlu0 %465
        %v467 = vsub.f32 %v460, %v466
        %v468 = vmul.f32 %v467, 1.442695
        %v469 = vpow.pop %v468
        %v470 = vsel %vm463, %v469, 0.0
        %471 = vadd.xlane.f32.xlu0 %v470
        %v472 = vpop.xlane.xlu0 %471
        %v473 = vrcp.pop %v472
        %v474 = vmul.f32 %v469, %v473
        %s475 = sld [smem:[#allocation4]]
        %s476 = ssub.f32 1.0, %s475
        %v477 = vstv %s475
        %v478 = vmul.f32 %v477, %v428
        %v479 = vstv %s476
        %v480 = vadd.f32 %v479, %v478
        %v481 = vmul.f32 %v474, %v480
        %v482 = vpack.c.bf16 %v481, %v481
        %483 = vrot.lane.b32.xlu0 %v440, 64
        %v484 = vpop.permute.xlu0 %483
        %v487 = vsel %vm463, %v482, 0
        %489 = vmatpush.bf16.msra.mxu0 0
        %490 = vmatpush.bf16.msra.mxu0 0
        %491 = vmatpush.bf16.msra.mxu0 0
        %492 = vmatpush.bf16.msra.mxu0 0
        %493 = vmatpush.bf16.msra.mxu0 0
        %494 = vmatpush.bf16.msra.mxu0 0
        %495 = vmatpush.bf16.msra.mxu0 0
        %496 = vmatpush.bf16.msra.mxu0 %v484
        %497 = vmatmul.bf16.gmra.mxu0 %v487
        %v498 = vpop.f32.mrf.mxu0
        %v499 = vadd.f32 0.0, %v498
        %v500 = vpop.f32.mrf.mxu0
        %501 = vdwg.mxu0
        %v502 = vld [vmem:[#allocation11] sm:$0xf]
        %v503 = vpack.c.bf16 %v499, %v499
        %v505 = vunpack.c.l.b16 %v433
        %v506 = vpack.c.b16 %v505, %v505
        %507 = vrot.lane.b32.xlu0 %v506, 120
        %v508 = vpop.permute.xlu0 %507
        %509 = vrot.lane.b32.xlu0 %v440, 88
        %v510 = vpop.permute.xlu0 %509
        %v512 = vsel %vm443, %v508, 0
        %v515 = vsel %vm443, %v510, 0
        %517 = vmatpush.bf16.xpose.msra.mxu0 0
        %518 = vmatpush.bf16.xpose.msra.mxu0 0
        %519 = vmatpush.bf16.xpose.msra.mxu0 0
        %520 = vmatpush.bf16.xpose.msra.mxu0 0
        %521 = vmatpush.bf16.xpose.msra.mxu0 0
        %522 = vmatpush.bf16.xpose.msra.mxu0 0
        %523 = vmatpush.bf16.xpose.msra.mxu0 0
        %524 = vmatpush.bf16.xpose.msra.mxu0 %v515
        %525 = vmatmul.bf16.gmra.mxu0 %v512
        %v526 = vpop.f32.mrf.mxu0
        %v527 = vadd.f32 0.0, %v526
        %v528 = vpop.f32.mrf.mxu0
        %529 = vdwg.mxu0
        %v530 = vsel %vm463, %v527, -inf
        %531 = vmax.xlane.f32.xlu0 %v530
        %v532 = vpop.xlane.xlu0 %531
        %v533 = vsub.f32 %v527, %v532
        %v534 = vmul.f32 %v533, 1.442695
        %v535 = vpow.pop %v534
        %v536 = vsel %vm463, %v535, 0.0
        %537 = vadd.xlane.f32.xlu0 %v536
        %v538 = vpop.xlane.xlu0 %537
        %v539 = vrcp.pop %v538
        %v540 = vmul.f32 %v535, %v539
        %s541 = sld [smem:[#allocation4 + $0x1]]
        %s542 = ssub.f32 1.0, %s541
        %v543 = vstv %s541
        %v544 = vmul.f32 %v543, %v428
        %v545 = vstv %s542
        %v546 = vadd.f32 %v545, %v544
        %v547 = vmul.f32 %v540, %v546
        %v548 = vpack.c.bf16 %v547, %v547
        %549 = vrot.lane.b32.xlu0 %v440, 56
        %v550 = vpop.permute.xlu0 %549
        %v553 = vsel %vm463, %v548, 0
        %555 = vmatpush.bf16.msra.mxu0 0
        %556 = vmatpush.bf16.msra.mxu0 0
        %557 = vmatpush.bf16.msra.mxu0 0
        %558 = vmatpush.bf16.msra.mxu0 0
        %559 = vmatpush.bf16.msra.mxu0 0
        %560 = vmatpush.bf16.msra.mxu0 0
        %561 = vmatpush.bf16.msra.mxu0 0
        %562 = vmatpush.bf16.msra.mxu0 %v550
        %563 = vmatmul.bf16.gmra.mxu0 %v553
        %v564 = vpop.f32.mrf.mxu0
        %v565 = vadd.f32 0.0, %v564
        %v566 = vpop.f32.mrf.mxu0
        %567 = vdwg.mxu0
        %v568 = vld [vmem:[#allocation11 + $0x4] sm:$0xf]
        %v569 = vpack.c.bf16 %v565, %v565
        %v571 = vsel %vm443, %v569, 0
        %vm573 = vcmask 1043456
        %v575 = vsel %vm573, %v568, 0
        %577 = vmatpush.bf16.msra.mxu0 0
        %578 = vmatpush.bf16.msra.mxu0 0
        %579 = vmatpush.bf16.msra.mxu0 0
        %580 = vmatpush.bf16.msra.mxu0 0
        %581 = vmatpush.bf16.msra.mxu0 0
        %582 = vmatpush.bf16.msra.mxu0 0
        %583 = vmatpush.bf16.msra.mxu0 0
        %584 = vmatpush.bf16.msra.mxu0 %v575
        %585 = vmatmul.bf16.gmra.mxu0 %v571
        %v586 = vpop.f32.mrf.mxu0
        %v587 = vadd.f32 0.0, %v586
        %v588 = vpop.f32.mrf.mxu0
        %589 = vdwg.mxu0
        %v591 = vsel %vm443, %v503, 0
        %v594 = vsel %vm573, %v502, 0
        %596 = vmatpush.bf16.msra.mxu0 0
        %597 = vmatpush.bf16.msra.mxu0 0
        %598 = vmatpush.bf16.msra.mxu0 0
        %599 = vmatpush.bf16.msra.mxu0 0
        %600 = vmatpush.bf16.msra.mxu0 0
        %601 = vmatpush.bf16.msra.mxu0 0
        %602 = vmatpush.bf16.msra.mxu0 0
        %603 = vmatpush.bf16.msra.mxu0 %v594
        %604 = vmatmul.bf16.gmra.mxu0 %v591
        %v605 = vpop.f32.mrf.mxu0
        %v606 = vadd.f32 %v587, %v605
        %v607 = vpop.f32.mrf.mxu0
        %608 = vdwg.mxu0
        %609 = vrot.lane.b32.xlu0 %v506, 112
        %v610 = vpop.permute.xlu0 %609
        %611 = vrot.lane.b32.xlu0 %v440, 80
        %v612 = vpop.permute.xlu0 %611
        %v614 = vsel %vm443, %v610, 0
        %v617 = vsel %vm443, %v612, 0
        %619 = vmatpush.bf16.xpose.msra.mxu0 0
        %620 = vmatpush.bf16.xpose.msra.mxu0 0
        %621 = vmatpush.bf16.xpose.msra.mxu0 0
        %622 = vmatpush.bf16.xpose.msra.mxu0 0
        %623 = vmatpush.bf16.xpose.msra.mxu0 0
        %624 = vmatpush.bf16.xpose.msra.mxu0 0
        %625 = vmatpush.bf16.xpose.msra.mxu0 0
        %626 = vmatpush.bf16.xpose.msra.mxu0 %v617
        %627 = vmatmul.bf16.gmra.mxu0 %v614
        %v628 = vpop.f32.mrf.mxu0
        %v629 = vadd.f32 0.0, %v628
        %v630 = vpop.f32.mrf.mxu0
        %631 = vdwg.mxu0
        %v632 = vsel %vm463, %v629, -inf
        %633 = vmax.xlane.f32.xlu0 %v632
        %v634 = vpop.xlane.xlu0 %633
        %v635 = vsub.f32 %v629, %v634
        %v636 = vmul.f32 %v635, 1.442695
        %v637 = vpow.pop %v636
        %v638 = vsel %vm463, %v637, 0.0
        %639 = vadd.xlane.f32.xlu0 %v638
        %v640 = vpop.xlane.xlu0 %639
        %v641 = vrcp.pop %v640
        %v642 = vmul.f32 %v637, %v641
        %s643 = sld [smem:[#allocation4 + $0x2]]
        %s644 = ssub.f32 1.0, %s643
        %v645 = vstv %s643
        %v646 = vmul.f32 %v645, %v428
        %v647 = vstv %s644
        %v648 = vadd.f32 %v647, %v646
        %v649 = vmul.f32 %v642, %v648
        %v650 = vpack.c.bf16 %v649, %v649
        %651 = vrot.lane.b32.xlu0 %v440, 48
        %v652 = vpop.permute.xlu0 %651
        %v655 = vsel %vm463, %v650, 0
        %657 = vmatpush.bf16.msra.mxu0 0
        %658 = vmatpush.bf16.msra.mxu0 0
        %659 = vmatpush.bf16.msra.mxu0 0
        %660 = vmatpush.bf16.msra.mxu0 0
        %661 = vmatpush.bf16.msra.mxu0 0
        %662 = vmatpush.bf16.msra.mxu0 0
        %663 = vmatpush.bf16.msra.mxu0 0
        %664 = vmatpush.bf16.msra.mxu0 %v652
        %665 = vmatmul.bf16.gmra.mxu0 %v655
        %v666 = vpop.f32.mrf.mxu0
        %v667 = vadd.f32 0.0, %v666
        %v668 = vpop.f32.mrf.mxu0
        %669 = vdwg.mxu0
        %v670 = vld [vmem:[#allocation11 + $0x8] sm:$0xf]
        %v671 = vpack.c.bf16 %v667, %v667
        %v673 = vsel %vm443, %v671, 0
        %v676 = vsel %vm573, %v670, 0
        %678 = vmatpush.bf16.msra.mxu0 0
        %679 = vmatpush.bf16.msra.mxu0 0
        %680 = vmatpush.bf16.msra.mxu0 0
        %681 = vmatpush.bf16.msra.mxu0 0
        %682 = vmatpush.bf16.msra.mxu0 0
        %683 = vmatpush.bf16.msra.mxu0 0
        %684 = vmatpush.bf16.msra.mxu0 0
        %685 = vmatpush.bf16.msra.mxu0 %v676
        %686 = vmatmul.bf16.gmra.mxu0 %v673
        %v687 = vpop.f32.mrf.mxu0
        %v688 = vadd.f32 0.0, %v687
        %v689 = vpop.f32.mrf.mxu0
        %690 = vdwg.mxu0
        %v691 = vadd.f32 %v606, %v688
        %692 = vrot.lane.b32.xlu0 %v506, 104
        %v693 = vpop.permute.xlu0 %692
        %694 = vrot.lane.b32.xlu0 %v440, 72
        %v695 = vpop.permute.xlu0 %694
        %v697 = vsel %vm443, %v693, 0
        %v700 = vsel %vm443, %v695, 0
        %702 = vmatpush.bf16.xpose.msra.mxu0 0
        %703 = vmatpush.bf16.xpose.msra.mxu0 0
        %704 = vmatpush.bf16.xpose.msra.mxu0 0
        %705 = vmatpush.bf16.xpose.msra.mxu0 0
        %706 = vmatpush.bf16.xpose.msra.mxu0 0
        %707 = vmatpush.bf16.xpose.msra.mxu0 0
        %708 = vmatpush.bf16.xpose.msra.mxu0 0
        %709 = vmatpush.bf16.xpose.msra.mxu0 %v700
        %710 = vmatmul.bf16.gmra.mxu0 %v697
        %v711 = vpop.f32.mrf.mxu0
        %v712 = vadd.f32 0.0, %v711
        %v713 = vpop.f32.mrf.mxu0
        %714 = vdwg.mxu0
        %v715 = vsel %vm463, %v712, -inf
        %716 = vmax.xlane.f32.xlu0 %v715
        %v717 = vpop.xlane.xlu0 %716
        %v718 = vsub.f32 %v712, %v717
        %v719 = vmul.f32 %v718, 1.442695
        %v720 = vpow.pop %v719
        %v721 = vsel %vm463, %v720, 0.0
        %722 = vadd.xlane.f32.xlu0 %v721
        %v723 = vpop.xlane.xlu0 %722
        %v724 = vrcp.pop %v723
        %v725 = vmul.f32 %v720, %v724
        %s726 = sld [smem:[#allocation4 + $0x3]]
        %s727 = ssub.f32 1.0, %s726
        %v728 = vstv %s726
        %v729 = vmul.f32 %v728, %v428
        %v730 = vstv %s727
        %v731 = vadd.f32 %v730, %v729
        %v732 = vmul.f32 %v725, %v731
        %v733 = vpack.c.bf16 %v732, %v732
        %734 = vrot.lane.b32.xlu0 %v440, 40
        %v735 = vpop.permute.xlu0 %734
        %v738 = vsel %vm463, %v733, 0
        %740 = vmatpush.bf16.msra.mxu0 0
        %741 = vmatpush.bf16.msra.mxu0 0
        %742 = vmatpush.bf16.msra.mxu0 0
        %743 = vmatpush.bf16.msra.mxu0 0
        %744 = vmatpush.bf16.msra.mxu0 0
        %745 = vmatpush.bf16.msra.mxu0 0
        %746 = vmatpush.bf16.msra.mxu0 0
        %747 = vmatpush.bf16.msra.mxu0 %v735
        %748 = vmatmul.bf16.gmra.mxu0 %v738
        %v749 = vpop.f32.mrf.mxu0
        %v750 = vadd.f32 0.0, %v749
        %v751 = vpop.f32.mrf.mxu0
        %752 = vdwg.mxu0
        %v753 = vld [vmem:[#allocation11 + $0xc] sm:$0xf]
        %v754 = vpack.c.bf16 %v750, %v750
        %v756 = vsel %vm443, %v754, 0
        %v759 = vsel %vm573, %v753, 0
        %761 = vmatpush.bf16.msra.mxu0 0
        %762 = vmatpush.bf16.msra.mxu0 0
        %763 = vmatpush.bf16.msra.mxu0 0
        %764 = vmatpush.bf16.msra.mxu0 0
        %765 = vmatpush.bf16.msra.mxu0 0
        %766 = vmatpush.bf16.msra.mxu0 0
        %767 = vmatpush.bf16.msra.mxu0 0
        %768 = vmatpush.bf16.msra.mxu0 %v759
        %769 = vmatmul.bf16.gmra.mxu0 %v756
        %v770 = vpop.f32.mrf.mxu0
        %v771 = vadd.f32 0.0, %v770
        %v772 = vpop.f32.mrf.mxu0
        %773 = vdwg.mxu0
        %v774 = vadd.f32 %v691, %v771
        %v775 = vld [vmem:[%s6] sm:$0x1]
        %v777 = vperm.slane %v775, 0
        %v779 = vadd.f32 %v774, %v777
        %vm780 = vcmask 261120
        %781 = vst.msk [vmem:[%s370] sm:$0xff] %vm780, %v779
        %s782 = sand.u32 %s196, 1
        %s783 = scalar_lea.sflag [#allocation7], %s782
        %s784 = sand.u32 %s196, 1
        %s785 = smul.addr %s784, 8
        %s786 = scalar_lea.vmem [#allocation13], %s785
        // Predicated region
        $region65: #{tpu_custom_call.1} parent=43 // pred_check
          %p787 = pneg %p206
        $region66: #{tpu_custom_call.1} parent=43 // pred_check_branch
          %789 = sbr.rel (%p787) target = $region68
        $region67: #{tpu_custom_call.1} parent=43 // pred_region
          %791 = vsyncadd %s783, 0
          %s792 = smul.addr %s40, 2
          %s793 = sadd.s32 %s41, %s792
          %s794 = smul.addr %s793, 8
          %s795 = scalar_lea.hbm %s7, %s794
          %s797 = sshll.u32 %s786, 4
          %s798 = int_to_ptr.vmem [resolvable:$true] %s797
          %s799 = sshll.u32 %s795, 4
          %s800 = int_to_ptr.hbm [resolvable:$true] %s799
          %802 = dma.vmem_to_hbm [thread:$0]  %s798, 128, %s800, %s783
        $region68: #{tpu_custom_call.1} parent=43 // pred_fallthru
          _
      $region44: #{tpu_custom_call.1} parent=5 // pred_fallthru
        _
      %p803 = scmp.le.s32.totalorder 2, %s31
      // Predicated region
      $region69: #{tpu_custom_call.1} parent=5 // pred_check
        %p804 = pneg %p803
      $region70: #{tpu_custom_call.1} parent=5 // pred_check_branch
        %806 = sbr.rel (%p804) target = $region72
      $region71: #{tpu_custom_call.1} parent=5 // pred_region
        %s807 = ssub.s32 %s31, 2
        // Predicated region
        $region73: #{tpu_custom_call.1} parent=71 // pred_check
          %p808 = pneg %p212
        $region74: #{tpu_custom_call.1} parent=71 // pred_check_branch
          %810 = sbr.rel (%p808) target = $region76
        $region75: #{tpu_custom_call.1} parent=71 // pred_region
          %s811 = sand.u32 %s197, 1
          %s812 = scalar_lea.sflag [#allocation7], %s811
          %s813 = sand.u32 %s197, 1
          %s814 = smul.addr %s813, 8
          %s815 = scalar_lea.vmem [#allocation13], %s814
          %817 = dma.done %s812, 128
        $region76: #{tpu_custom_call.1} parent=71 // pred_fallthru
          _
      $region72: #{tpu_custom_call.1} parent=5 // pred_fallthru
        _
    $region6: #{tpu_custom_call.1} parent=1 // loop_footer
      %s35 = sadd.s32 1, %s31
    $region7: #{tpu_custom_call.1} parent=1 // loop_footer_branch
      %30 = sbr.rel target = $region3
    $region8: #{tpu_custom_call.1} parent=1 // loop_exit
      _
    %818 = vsyncpa [#allocation6], 1
    %s819 = scalar_lea.sflag [#allocation6], 1
    %820 = vsyncpa %s819, 1
    %821 = vsyncpa [#allocation9], 1
    %s822 = scalar_lea.sflag [#allocation9], 1
    %823 = vsyncpa %s822, 1
    %824 = vsyncpa [#allocation12], 1
    %825 = vsyncpa [#allocation7], 1
    %s826 = scalar_lea.sflag [#allocation7], 1
    %827 = vsyncpa %s826, 1

</llo_original>
